<compile_context>
chip_gen: v5e
topology: v5e:2x2
jax: 0.10.0
libtpu: 0.0.40
codegen_flags: <defaults>
</compile_context>

<pallas_src>
import jax
import jax.numpy as jnp
from jax.experimental import pallas as pl
from jax.experimental.pallas import tpu as pltpu


def _round_up(n, m):
    return ((n + m - 1) // m) * m


# ---------------------------------------------------------------------------
# Pallas kernel: fc1+relu, fc2+relu, fused (mean|log_std) head, fused clamp.
# One grid point processes a (TB, ...) batch tile; weights are VMEM-resident.
# ---------------------------------------------------------------------------
def policy_fwd_kernel(x_ref, w1_ref, b12_ref, w2_ref, wh_ref, bhc_ref, out_ref):
    # Cast x in-kernel (cheap VPU work hidden under the matmul / DMA).
    x = x_ref[...].astype(w1_ref.dtype)                               # [TB, D_in]

    # fc1 + relu  (f32 accumulate, f32 elementwise)
    h1 = jnp.dot(x, w1_ref[...], preferred_element_type=jnp.float32)
    h1 = jnp.maximum(h1 + b12_ref[0:1, :], 0.0)                       # [TB, Hp]

    # fc2 + relu
    h2 = jnp.dot(h1.astype(w2_ref.dtype), w2_ref[...],
                 preferred_element_type=jnp.float32)
    h2 = jnp.maximum(h2 + b12_ref[1:2, :], 0.0)                       # [TB, Hp]

    # fused mean|log_std head: single MXU matmul -> narrow (TB, 2*out) tile
    y = jnp.dot(h2.astype(wh_ref.dtype), wh_ref[...],
                preferred_element_type=jnp.float32)
    y = y + bhc_ref[0:1, :]                                           # fused bias
    # Per-lane clamp: lo/hi are -inf/+inf on mean lanes, -20/2 on log_std lanes.
    y = jnp.minimum(jnp.maximum(y, bhc_ref[1:2, :]), bhc_ref[2:3, :])
    out_ref[...] = y.astype(out_ref.dtype)


# ---------------------------------------------------------------------------
# Parameter packing: pad hidden -> 128 lanes, fuse the two heads into one
# (Hp, 2*out) weight, pack b1/b2 into one (2, Hp) ref, and pack the head
# bias together with per-lane clamp bounds into one (3, 2*out) ref.
# ---------------------------------------------------------------------------
def pack_policy_params(params, matmul_dtype=jnp.bfloat16):
    w1, b1, w2, b2, wm, bm, ws, bs = params
    din, h = w1.shape
    out = wm.shape[1]
    hp = _round_up(max(h, 128), 128)          # one full 128-lane tile
    n_out = 2 * out                           # narrow packed output width

    w1p = jnp.zeros((din, hp), jnp.float32).at[:, :h].set(w1)
    w2p = jnp.zeros((hp, hp), jnp.float32).at[:h, :h].set(w2)
    whp = (jnp.zeros((hp, n_out), jnp.float32)
           .at[:h, :out].set(wm)
           .at[:h, out:].set(ws))
    b12 = (jnp.zeros((2, hp), jnp.float32)
           .at[0, :h].set(b1.reshape(-1))
           .at[1, :h].set(b2.reshape(-1)))

    # Row 0: fused bias (bm | bs); rows 1/2: per-lane clamp lo/hi.
    bhc = jnp.zeros((3, n_out), jnp.float32)
    bhc = bhc.at[0, :out].set(bm.reshape(-1)).at[0, out:].set(bs.reshape(-1))
    bhc = bhc.at[1, :out].set(-jnp.inf).at[1, out:].set(-20.0)
    bhc = bhc.at[2, :out].set(jnp.inf).at[2, out:].set(2.0)

    return (w1p.astype(matmul_dtype), b12, w2p.astype(matmul_dtype),
            whp.astype(matmul_dtype), bhc, out)


# ---------------------------------------------------------------------------
# Batch-tile selection.
# ---------------------------------------------------------------------------
def _num_tensorcores():
    """TensorCores visible to a single Pallas kernel on this chip."""
    try:
        kind = jax.devices()[0].device_kind.lower()
    except Exception:  # pragma: no cover - be robust to odd backends
        return 1
    if "v7" in kind or "v4" in kind or "v5p" in kind:
        return 2
    return 1


def _choose_batch_tile(b, num_cores, cap):
    # Whole batch in one grid step: no pipeline, no padding copy of x.
    # On multi-core chips prefer >=2 steps once the batch is large enough
    # to benefit from sharding across TensorCores.
    if b <= cap and (num_cores <= 1 or b < 256):
        return b
    target = min(cap, _round_up(pl.cdiv(b, max(num_cores, 1)), 8))
    target = max(target, 8)
    # Prefer a tile that exactly divides b (avoids a padded HBM copy of x),
    # as long as it stays within 2x of the target step size.
    if b % target:
        for cand in range(target, max(target // 2, 8) - 1, -8):
            if b % cand == 0:
                return cand
    return target


# ---------------------------------------------------------------------------
# Wrapper: batch-gridded pallas_call, weights VMEM-resident, batch "parallel".
# ---------------------------------------------------------------------------
def policy_forward(x, params, *, block_batch=None, matmul_dtype=jnp.bfloat16,
                   max_block_batch=1024):
    w1p, b12, w2p, whp, bhc, out_dim = pack_policy_params(params, matmul_dtype)
    b, din = x.shape
    hp = w1p.shape[1]
    n_out = whp.shape[1]

    if block_batch is None:
        tb = _choose_batch_tile(b, _num_tensorcores(), int(max_block_batch))
    else:
        tb = int(block_batch)
    tb = max(min(tb, b), 1)
    if tb != b:
        tb = _round_up(tb, 8)       # sublane alignment for multi-step grids
        if tb >= b:
            tb = b                  # degenerates to a single full-batch step

    b_pad = b if b % tb == 0 else _round_up(b, tb)
    xp = x
    if b_pad != b:
        # Ragged tail: materialize a zero-padded copy (only when tb ∤ b).
        xp = jnp.zeros((b_pad, din), x.dtype).at[:b].set(x)

    packed = pl.pallas_call(
        policy_fwd_kernel,
        out_shape=jax.ShapeDtypeStruct((b_pad, n_out), jnp.float32),
        grid=(b_pad // tb,),
        in_specs=[
            pl.BlockSpec((tb, din), lambda i: (i, 0)),     # x: batch-tiled
            pl.BlockSpec((din, hp), lambda i: (0, 0)),     # w1: resident
            pl.BlockSpec((2, hp), lambda i: (0, 0)),       # b1|b2: resident
            pl.BlockSpec((hp, hp), lambda i: (0, 0)),      # w2: resident
            pl.BlockSpec((hp, n_out), lambda i: (0, 0)),   # wm|ws fused: resident
            pl.BlockSpec((3, n_out), lambda i: (0, 0)),    # bias + clamp lo/hi
        ],
        out_specs=pl.BlockSpec((tb, n_out), lambda i: (i, 0)),
        compiler_params=pltpu.CompilerParams(
            dimension_semantics=("parallel",)),
    )(xp, w1p, b12, w2p, whp, bhc)

    mean = packed[:b, :out_dim]
    log_std = packed[:b, out_dim:]
    return mean, log_std


# ---------------------------------------------------------------------------
# Deterministic parameter init mirroring PolicyNetwork._init_weights:
#   orthogonal_(gain) on weights, constant_ on biases.
# ---------------------------------------------------------------------------
def orthogonal_init(key, out_features, in_features, gain):
    a = jax.random.normal(key, (out_features, in_features), dtype=jnp.float32)
    flat = a if out_features >= in_features else a.T
    q, r = jnp.linalg.qr(flat)
    d = jnp.sign(jnp.diagonal(r))
    q = q * d[None, :]
    w = q if out_features >= in_features else q.T      # (out, in)
    w = gain * w[:out_features, :in_features]
    return w.T.astype(jnp.float32)                     # (in, out) for the kernel


def init_policy_params(key, input_dim, output_dim, hidden_dim=64):
    k1, k2, k3, k4 = jax.random.split(key, 4)
    w1 = orthogonal_init(k1, hidden_dim, input_dim, gain=1.414)
    b1 = jnp.zeros((1, hidden_dim), jnp.float32)
    w2 = orthogonal_init(k2, hidden_dim, hidden_dim, gain=1.414)
    b2 = jnp.zeros((1, hidden_dim), jnp.float32)
    wm = orthogonal_init(k3, output_dim, hidden_dim, gain=0.01)
    bm = jnp.zeros((1, output_dim), jnp.float32)
    ws = orthogonal_init(k4, output_dim, hidden_dim, gain=0.01)
    bs = jnp.full((1, output_dim), 0.5, jnp.float32)
    return (w1, b1, w2, b2, wm, bm, ws, bs)


# Pure-JAX reference for correctness checks.
def policy_forward_ref(x, params):
    w1, b1, w2, b2, wm, bm, ws, bs = params
    h1 = jnp.maximum(x @ w1 + b1, 0.0)
    h2 = jnp.maximum(h1 @ w2 + b2, 0.0)
    mean = h2 @ wm + bm
    log_std = jnp.clip(h2 @ ws + bs, -20.0, 2.0)
    return mean, log_std


# TODO(synk): get_action / evaluate (Normal sampling, log_prob, entropy) are
# host-side stochastic utilities outside the forward pass and are not kernels.

if __name__ == "__main__":
    key = jax.random.PRNGKey(0)
    kx, kp = jax.random.split(key)

    batch, input_dim, hidden_dim, output_dim = 16, 16, 64, 4

    x = jax.random.normal(kx, (batch, input_dim), dtype=jnp.float32)
    params = init_policy_params(kp, input_dim, output_dim, hidden_dim)

    mean_ref, log_std_ref = policy_forward_ref(x, params)

    # 1) f32 matmul path, small explicit tile -> exercises a multi-step grid.
    mean, log_std = policy_forward(x, params, block_batch=8,
                                   matmul_dtype=jnp.float32)
    jax.block_until_ready((mean, log_std))
    assert mean.shape == (batch, output_dim)
    assert log_std.shape == (batch, output_dim)
    assert jnp.allclose(mean, mean_ref, atol=1e-5, rtol=1e-5)
    assert jnp.allclose(log_std, log_std_ref, atol=1e-5, rtol=1e-5)

    # 2) Default path: bf16 matmuls / f32 accumulate, auto tile (single step).
    mean_bf, log_std_bf = policy_forward(x, params)
    jax.block_until_ready((mean_bf, log_std_bf))
    assert jnp.allclose(mean_bf, mean_ref, atol=3e-2, rtol=3e-2)
    assert jnp.allclose(log_std_bf, log_std_ref, atol=3e-2, rtol=3e-2)

    # 3) Ragged batch (tile does not divide b) -> exercises the pad path.
    xr = x[:13]
    mr_ref, lr_ref = policy_forward_ref(xr, params)
    mr, lr = policy_forward(xr, params, block_batch=8,
                            matmul_dtype=jnp.float32)
    jax.block_until_ready((mr, lr))
    assert mr.shape == (13, output_dim) and lr.shape == (13, output_dim)
    assert jnp.allclose(mr, mr_ref, atol=1e-5, rtol=1e-5)
    assert jnp.allclose(lr, lr_ref, atol=1e-5, rtol=1e-5)

    print("KERNEL_OK")
</pallas_src>

<mosaic_0001>
module attributes {stable_mosaic.version = 11 : i64} {
  func.func @policy_fwd_kernel(%arg0: i32, %arg1: memref<8x16xf32, #tpu.memory_space<vmem>>, %arg2: memref<16x128xf32, #tpu.memory_space<vmem>>, %arg3: memref<2x128xf32, #tpu.memory_space<vmem>>, %arg4: memref<128x128xf32, #tpu.memory_space<vmem>>, %arg5: memref<128x8xf32, #tpu.memory_space<vmem>>, %arg6: memref<3x8xf32, #tpu.memory_space<vmem>>, %arg7: memref<8x8xf32, #tpu.memory_space<vmem>>) attributes {dimension_semantics = [#tpu.dimension_semantics<parallel>], iteration_bounds = array<i64: 2>, scalar_prefetch = 0 : i64, scratch_operands = 0 : i64, tpu.core_type = #tpu.core_type<tc>, window_params = [{transform_indices = @transform_0, window_bounds = array<i64: 8, 16>}, {pipeline_mode = #tpu.pipeline_mode<synchronous>, transform_indices = @transform_1, window_bounds = array<i64: 16, 128>}, {pipeline_mode = #tpu.pipeline_mode<synchronous>, transform_indices = @transform_2, window_bounds = array<i64: 2, 128>}, {pipeline_mode = #tpu.pipeline_mode<synchronous>, transform_indices = @transform_3, window_bounds = array<i64: 128, 128>}, {pipeline_mode = #tpu.pipeline_mode<synchronous>, transform_indices = @transform_4, window_bounds = array<i64: 128, 8>}, {pipeline_mode = #tpu.pipeline_mode<synchronous>, transform_indices = @transform_5, window_bounds = array<i64: 3, 8>}, {transform_indices = @transform_6, window_bounds = array<i64: 8, 8>}]} {
    %c0 = arith.constant 0 : index
    %c0_0 = arith.constant 0 : index
    %0 = vector.load %arg1[%c0, %c0_0] : memref<8x16xf32, #tpu.memory_space<vmem>>, vector<8x16xf32>
    %c0_1 = arith.constant 0 : index
    %c0_2 = arith.constant 0 : index
    %1 = vector.load %arg2[%c0_1, %c0_2] : memref<16x128xf32, #tpu.memory_space<vmem>>, vector<16x128xf32>
    %cst = arith.constant dense<0.000000e+00> : vector<8x128xf32>
    %2 = tpu.matmul %0, %1, %cst {dimension_numbers = #tpu.dot_dimension_numbers<[1], [0], [0], [1], [0, 0, 1, 1], [], []>} : vector<8x16xf32>, vector<16x128xf32>, vector<8x128xf32> -> vector<8x128xf32>
    %c0_3 = arith.constant 0 : index
    %c0_4 = arith.constant 0 : index
    %3 = vector.load %arg3[%c0_3, %c0_4] : memref<2x128xf32, #tpu.memory_space<vmem>>, vector<1x128xf32>
    %4 = vector.broadcast %3 : vector<1x128xf32> to vector<8x128xf32>
    %5 = arith.addf %2, %4 : vector<8x128xf32>
    %cst_5 = arith.constant 0.000000e+00 : f32
    %6 = vector.broadcast %cst_5 : f32 to vector<8x128xf32>
    %7 = arith.maximumf %5, %6 : vector<8x128xf32>
    %c0_6 = arith.constant 0 : index
    %c0_7 = arith.constant 0 : index
    %8 = vector.load %arg4[%c0_6, %c0_7] : memref<128x128xf32, #tpu.memory_space<vmem>>, vector<128x128xf32>
    %cst_8 = arith.constant dense<0.000000e+00> : vector<8x128xf32>
    %9 = tpu.matmul %7, %8, %cst_8 {dimension_numbers = #tpu.dot_dimension_numbers<[1], [0], [0], [1], [0, 0, 1, 1], [], []>} : vector<8x128xf32>, vector<128x128xf32>, vector<8x128xf32> -> vector<8x128xf32>
    %c1 = arith.constant 1 : index
    %c0_9 = arith.constant 0 : index
    %10 = vector.load %arg3[%c1, %c0_9] : memref<2x128xf32, #tpu.memory_space<vmem>>, vector<1x128xf32>
    %11 = vector.broadcast %10 : vector<1x128xf32> to vector<8x128xf32>
    %12 = arith.addf %9, %11 : vector<8x128xf32>
    %cst_10 = arith.constant 0.000000e+00 : f32
    %13 = vector.broadcast %cst_10 : f32 to vector<8x128xf32>
    %14 = arith.maximumf %12, %13 : vector<8x128xf32>
    %c0_11 = arith.constant 0 : index
    %c0_12 = arith.constant 0 : index
    %15 = vector.load %arg5[%c0_11, %c0_12] : memref<128x8xf32, #tpu.memory_space<vmem>>, vector<128x8xf32>
    %cst_13 = arith.constant dense<0.000000e+00> : vector<8x8xf32>
    %16 = tpu.matmul %14, %15, %cst_13 {dimension_numbers = #tpu.dot_dimension_numbers<[1], [0], [0], [1], [0, 0, 1, 1], [], []>} : vector<8x128xf32>, vector<128x8xf32>, vector<8x8xf32> -> vector<8x8xf32>
    %c0_14 = arith.constant 0 : index
    %c0_15 = arith.constant 0 : index
    %17 = vector.load %arg6[%c0_14, %c0_15] : memref<3x8xf32, #tpu.memory_space<vmem>>, vector<1x8xf32>
    %18 = vector.broadcast %17 : vector<1x8xf32> to vector<8x8xf32>
    %19 = arith.addf %16, %18 : vector<8x8xf32>
    %c1_16 = arith.constant 1 : index
    %c0_17 = arith.constant 0 : index
    %20 = vector.load %arg6[%c1_16, %c0_17] : memref<3x8xf32, #tpu.memory_space<vmem>>, vector<1x8xf32>
    %21 = vector.broadcast %20 : vector<1x8xf32> to vector<8x8xf32>
    %22 = arith.maximumf %19, %21 : vector<8x8xf32>
    %c2 = arith.constant 2 : index
    %c0_18 = arith.constant 0 : index
    %23 = vector.load %arg6[%c2, %c0_18] : memref<3x8xf32, #tpu.memory_space<vmem>>, vector<1x8xf32>
    %24 = vector.broadcast %23 : vector<1x8xf32> to vector<8x8xf32>
    %25 = arith.minimumf %22, %24 : vector<8x8xf32>
    %c0_19 = arith.constant 0 : index
    %c0_20 = arith.constant 0 : index
    %26 = vector.load %arg7[%c0_19, %c0_20] : memref<8x8xf32, #tpu.memory_space<vmem>>, vector<8x8xf32>
    tpu.vector_store %arg7[%c0_19, %c0_20], %25 {strides = array<i32>} : memref<8x8xf32, #tpu.memory_space<vmem>>, vector<8x8xf32>,
    return
  }
  func.func @transform_0(%arg0: i32) -> (i32, i32) {
    %c0_i32 = arith.constant 0 : i32
    %c0_i32_0 = arith.constant 0 : i32
    return %arg0, %c0_i32 : i32, i32
  }
  func.func @transform_1(%arg0: i32) -> (i32, i32) {
    %c0_i32 = arith.constant 0 : i32
    %c0_i32_0 = arith.constant 0 : i32
    %c0_i32_1 = arith.constant 0 : i32
    return %c0_i32, %c0_i32_0 : i32, i32
  }
  func.func @transform_2(%arg0: i32) -> (i32, i32) {
    %c0_i32 = arith.constant 0 : i32
    %c0_i32_0 = arith.constant 0 : i32
    %c0_i32_1 = arith.constant 0 : i32
    return %c0_i32, %c0_i32_0 : i32, i32
  }
  func.func @transform_3(%arg0: i32) -> (i32, i32) {
    %c0_i32 = arith.constant 0 : i32
    %c0_i32_0 = arith.constant 0 : i32
    %c0_i32_1 = arith.constant 0 : i32
    return %c0_i32, %c0_i32_0 : i32, i32
  }
  func.func @transform_4(%arg0: i32) -> (i32, i32) {
    %c0_i32 = arith.constant 0 : i32
    %c0_i32_0 = arith.constant 0 : i32
    %c0_i32_1 = arith.constant 0 : i32
    return %c0_i32, %c0_i32_0 : i32, i32
  }
  func.func @transform_5(%arg0: i32) -> (i32, i32) {
    %c0_i32 = arith.constant 0 : i32
    %c0_i32_0 = arith.constant 0 : i32
    %c0_i32_1 = arith.constant 0 : i32
    return %c0_i32, %c0_i32_0 : i32, i32
  }
  func.func @transform_6(%arg0: i32) -> (i32, i32) {
    %c0_i32 = arith.constant 0 : i32
    %c0_i32_0 = arith.constant 0 : i32
    return %arg0, %c0_i32 : i32, i32
  }
}

</mosaic_0001>

<llo_original>
// kernel: tpu_custom_call.1
$region0: #{tpu_custom_call.1}
  #allocation0 [shape = 'u32[]', space=smem, size = 0x4, offset = 0x4, fixed_abs, tag = 'smem constant byte address 0x4 - core index']
  #allocation1 [shape = 'u32[72,128]{1,0:T(1,128)}', space=vmem, size = 0x9000, scoped, tag = 'internal scratch']
  %s0 = inlined_call_operand.hbm [shape: f32[16,16], index: 0, kind: input, shape index: {}]
  %s1 = inlined_call_operand.hbm [shape: f32[16,128], index: 1, kind: input, shape index: {}]
  %s2 = inlined_call_operand.vmem [shape: f32[2,128], index: 2, kind: input, shape index: {}]
  %s3 = inlined_call_operand.vmem [shape: f32[128,128], index: 3, kind: input, shape index: {}]
  %s4 = inlined_call_operand.vmem [shape: f32[128,8], index: 4, kind: input, shape index: {}]
  %s5 = inlined_call_operand.vmem [shape: f32[3,8], index: 5, kind: input, shape index: {}]
  %s6 = inlined_call_operand.vmem [shape: f32[16,8], index: 6, kind: output, shape index: {}]
  %s7 = sld [smem:[#allocation0]]
  $region65: #{tpu_custom_call.1} parent=0
    _
  %s9 = ssub.s32 1, %s7
  %s10 = scalar_select 0, %s9, %s7
  $region1: #{tpu_custom_call.1} parent=0
    #allocation2 [shape = 'u8[8192]{0}', space=vmem, size = 0x2000, scoped, tag = 'input window, operand 0']
    #allocation3 [shape = 's32[2]{0}', space=sflag, size = 0x8, scoped, tag = 'scoped memory for tpu_custom_call.1']
    #allocation4 [shape = 'u8[8192]{0}', space=vmem, size = 0x2000, scoped, tag = 'input window, operand 1, single buffered']
    #allocation5 [shape = 's32[1]{0}', space=sflag, size = 0x4, scoped, tag = 'scoped memory for tpu_custom_call.1']
    %11 = vsyncpa [#allocation3], 0
    %s12 = scalar_lea.sflag [#allocation3], 1
    %13 = vsyncpa %s12, 0
    %14 = vsyncpa [#allocation5], 0
    loop: start=0, step=1, limit=4
    $region2: #{tpu_custom_call.1} parent=1 // loop_pre_header
      _
    $region3: #{tpu_custom_call.1} parent=1 // loop_header
      %s16 = sphi 0, %s20
      %p17 = scmp.ge.s32.totalorder %s16, 4
      %s26 = sphi 0, %s28
      %s29 = sphi 0, %s26
      %s30 = sphi 0, %s29
      %s46 = sphi 0, %s30
      %s50 = sphi 0, %s50
      %s52 = sphi 0, %s50
      %s53 = sphi 0, %s52
      %s67 = sphi 0, %s53
      %s71 = sphi 0, %s71
      %s73 = sphi 0, %s71
      %s74 = sphi 0, %s73
      %s88 = sphi 0, %s74
      %s92 = sphi 0, %s92
      %s94 = sphi 0, %s92
      %s95 = sphi 0, %s94
      %s109 = sphi 0, %s95
      %s113 = sphi 0, %s113
      %s115 = sphi 0, %s113
      %s116 = sphi 0, %s115
      %s130 = sphi 0, %s116
      %s134 = sphi 0, %s134
      %s136 = sphi 0, %s134
      %s137 = sphi 0, %s136
      %s151 = sphi 0, %s137
      %s157 = sphi 0, %s159
      %s160 = sphi 0, %s157
      %s161 = sphi 0, %s160
      %s177 = sphi 0, %s161
    $region4: #{tpu_custom_call.1} parent=1 // loop_header_branch
      %19 = sbr.rel (%p17) target = $region8
    $region5: #{tpu_custom_call.1} parent=1 // loop_body
      %s21 = ssub.s32 %s16, 1
      %s22 = ssub.s32 %s16, 2
      %s23 = sadd.s32 %s16, 1
      %s24 = ssub.s32 %s16, %s23
      %p25 = scmp.eq.s32.totalorder %s24, 0
      %s27 = sadd.s32 %s26, 1
      %s28 = scalar_select %p25, %s26, %s27
      %p31 = pneg %p25
      %p32 = scmp.eq.s32.totalorder %s16, 1
      %p33 = por %p31, %p32
      %p34 = scmp.ne.s32.totalorder %s26, %s29
      %p35 = scmp.eq.s32.totalorder %s16, 0
      %p36 = por %p34, %p35
      %p37 = scmp.ne.s32.totalorder %s26, %s29
      %p38 = scmp.eq.s32.totalorder %s21, 1
      %p39 = por %p37, %p38
      %p40 = scmp.ne.s32.totalorder %s29, %s30
      %p41 = scmp.eq.s32.totalorder %s21, 0
      %p42 = por %p40, %p41
      %p43 = scmp.ne.s32.totalorder %s29, %s30
      %p44 = scmp.eq.s32.totalorder %s22, 1
      %p45 = por %p43, %p44
      %p47 = scmp.ne.s32.totalorder %s30, %s46
      %p48 = scmp.eq.s32.totalorder %s22, 0
      %p49 = por %p47, %p48
      %s51 = sadd.s32 %s50, 1
      %p54 = scmp.eq.s32.totalorder %s16, 1
      %p55 = scmp.ne.s32.totalorder %s50, %s52
      %p56 = scmp.eq.s32.totalorder %s16, 0
      %p57 = por %p55, %p56
      %p58 = scmp.ne.s32.totalorder %s50, %s52
      %p59 = scmp.eq.s32.totalorder %s21, 1
      %p60 = por %p58, %p59
      %p61 = scmp.ne.s32.totalorder %s52, %s53
      %p62 = scmp.eq.s32.totalorder %s21, 0
      %p63 = por %p61, %p62
      %p64 = scmp.ne.s32.totalorder %s52, %s53
      %p65 = scmp.eq.s32.totalorder %s22, 1
      %p66 = por %p64, %p65
      %p68 = scmp.ne.s32.totalorder %s53, %s67
      %p69 = scmp.eq.s32.totalorder %s22, 0
      %p70 = por %p68, %p69
      %s72 = sadd.s32 %s71, 1
      %p75 = scmp.eq.s32.totalorder %s16, 1
      %p76 = scmp.ne.s32.totalorder %s71, %s73
      %p77 = scmp.eq.s32.totalorder %s16, 0
      %p78 = por %p76, %p77
      %p79 = scmp.ne.s32.totalorder %s71, %s73
      %p80 = scmp.eq.s32.totalorder %s21, 1
      %p81 = por %p79, %p80
      %p82 = scmp.ne.s32.totalorder %s73, %s74
      %p83 = scmp.eq.s32.totalorder %s21, 0
      %p84 = por %p82, %p83
      %p85 = scmp.ne.s32.totalorder %s73, %s74
      %p86 = scmp.eq.s32.totalorder %s22, 1
      %p87 = por %p85, %p86
      %p89 = scmp.ne.s32.totalorder %s74, %s88
      %p90 = scmp.eq.s32.totalorder %s22, 0
      %p91 = por %p89, %p90
      %s93 = sadd.s32 %s92, 1
      %p96 = scmp.eq.s32.totalorder %s16, 1
      %p97 = scmp.ne.s32.totalorder %s92, %s94
      %p98 = scmp.eq.s32.totalorder %s16, 0
      %p99 = por %p97, %p98
      %p100 = scmp.ne.s32.totalorder %s92, %s94
      %p101 = scmp.eq.s32.totalorder %s21, 1
      %p102 = por %p100, %p101
      %p103 = scmp.ne.s32.totalorder %s94, %s95
      %p104 = scmp.eq.s32.totalorder %s21, 0
      %p105 = por %p103, %p104
      %p106 = scmp.ne.s32.totalorder %s94, %s95
      %p107 = scmp.eq.s32.totalorder %s22, 1
      %p108 = por %p106, %p107
      %p110 = scmp.ne.s32.totalorder %s95, %s109
      %p111 = scmp.eq.s32.totalorder %s22, 0
      %p112 = por %p110, %p111
      %s114 = sadd.s32 %s113, 1
      %p117 = scmp.eq.s32.totalorder %s16, 1
      %p118 = scmp.ne.s32.totalorder %s113, %s115
      %p119 = scmp.eq.s32.totalorder %s16, 0
      %p120 = por %p118, %p119
      %p121 = scmp.ne.s32.totalorder %s113, %s115
      %p122 = scmp.eq.s32.totalorder %s21, 1
      %p123 = por %p121, %p122
      %p124 = scmp.ne.s32.totalorder %s115, %s116
      %p125 = scmp.eq.s32.totalorder %s21, 0
      %p126 = por %p124, %p125
      %p127 = scmp.ne.s32.totalorder %s115, %s116
      %p128 = scmp.eq.s32.totalorder %s22, 1
      %p129 = por %p127, %p128
      %p131 = scmp.ne.s32.totalorder %s116, %s130
      %p132 = scmp.eq.s32.totalorder %s22, 0
      %p133 = por %p131, %p132
      %s135 = sadd.s32 %s134, 1
      %p138 = scmp.eq.s32.totalorder %s16, 1
      %p139 = scmp.ne.s32.totalorder %s134, %s136
      %p140 = scmp.eq.s32.totalorder %s16, 0
      %p141 = por %p139, %p140
      %p142 = scmp.ne.s32.totalorder %s134, %s136
      %p143 = scmp.eq.s32.totalorder %s21, 1
      %p144 = por %p142, %p143
      %p145 = scmp.ne.s32.totalorder %s136, %s137
      %p146 = scmp.eq.s32.totalorder %s21, 0
      %p147 = por %p145, %p146
      %p148 = scmp.ne.s32.totalorder %s136, %s137
      %p149 = scmp.eq.s32.totalorder %s22, 1
      %p150 = por %p148, %p149
      %p152 = scmp.ne.s32.totalorder %s137, %s151
      %p153 = scmp.eq.s32.totalorder %s22, 0
      %p154 = por %p152, %p153
      %s155 = ssub.s32 %s16, %s23
      %p156 = scmp.eq.s32.totalorder %s155, 0
      %s158 = sadd.s32 %s157, 1
      %s159 = scalar_select %p156, %s157, %s158
      %p162 = pneg %p156
      %p163 = scmp.eq.s32.totalorder %s16, 1
      %p164 = por %p162, %p163
      %p165 = scmp.ne.s32.totalorder %s157, %s160
      %p166 = scmp.eq.s32.totalorder %s16, 0
      %p167 = por %p165, %p166
      %p168 = scmp.ne.s32.totalorder %s157, %s160
      %p169 = scmp.eq.s32.totalorder %s21, 1
      %p170 = por %p168, %p169
      %p171 = scmp.ne.s32.totalorder %s160, %s161
      %p172 = scmp.eq.s32.totalorder %s21, 0
      %p173 = por %p171, %p172
      %p174 = scmp.ne.s32.totalorder %s160, %s161
      %p175 = scmp.eq.s32.totalorder %s22, 1
      %p176 = por %p174, %p175
      %p178 = scmp.ne.s32.totalorder %s161, %s177
      %p179 = scmp.eq.s32.totalorder %s22, 0
      %p180 = por %p178, %p179
      %p181 = scmp.le.s32.totalorder 1, %s16
      %p182 = scmp.lt.s32.totalorder %s16, 3
      %p183 = pnand %p181, %p182
      %p184 = pneg %p183
      // Predicated region
      $region9: #{tpu_custom_call.1} parent=5 // pred_check
        _
      $region10: #{tpu_custom_call.1} parent=5 // pred_check_branch
        %186 = sbr.rel (%p183) target = $region12
      $region11: #{tpu_custom_call.1} parent=5 // pred_region
        %s187 = ssub.s32 %s16, 1
        // Predicated region
        $region13: #{tpu_custom_call.1} parent=11 // pred_check
          %p188 = pneg %p63
        $region14: #{tpu_custom_call.1} parent=11 // pred_check_branch
          %190 = sbr.rel (%p188) target = $region16
        $region15: #{tpu_custom_call.1} parent=11 // pred_region
          %192 = vsyncadd [#allocation5], 0
          %s193 = sshll.u32 %s1, 4
          %s194 = int_to_ptr.hbm [resolvable:$true] %s193
          %s195 = sshll.u32 [#allocation4], 4
          %s196 = int_to_ptr.vmem [resolvable:$true] %s195
          %201 = dma.hbm_to_vmem [thread:$0]  %s194, 256, %s196, [#allocation5], 128, 128, 8
        $region16: #{tpu_custom_call.1} parent=11 // pred_fallthru
          _
        // Predicated region
        $region17: #{tpu_custom_call.1} parent=11 // pred_check
          %p202 = pneg %p84
        $region18: #{tpu_custom_call.1} parent=11 // pred_check_branch
          %204 = sbr.rel (%p202) target = $region20
        $region19: #{tpu_custom_call.1} parent=11 // pred_region
          _
        $region20: #{tpu_custom_call.1} parent=11 // pred_fallthru
          _
        // Predicated region
        $region21: #{tpu_custom_call.1} parent=11 // pred_check
          %p205 = pneg %p105
        $region22: #{tpu_custom_call.1} parent=11 // pred_check_branch
          %207 = sbr.rel (%p205) target = $region24
        $region23: #{tpu_custom_call.1} parent=11 // pred_region
          _
        $region24: #{tpu_custom_call.1} parent=11 // pred_fallthru
          _
        // Predicated region
        $region25: #{tpu_custom_call.1} parent=11 // pred_check
          %p208 = pneg %p126
        $region26: #{tpu_custom_call.1} parent=11 // pred_check_branch
          %210 = sbr.rel (%p208) target = $region28
        $region27: #{tpu_custom_call.1} parent=11 // pred_region
          _
        $region28: #{tpu_custom_call.1} parent=11 // pred_fallthru
          _
        // Predicated region
        $region29: #{tpu_custom_call.1} parent=11 // pred_check
          %p211 = pneg %p147
        $region30: #{tpu_custom_call.1} parent=11 // pred_check_branch
          %213 = sbr.rel (%p211) target = $region32
        $region31: #{tpu_custom_call.1} parent=11 // pred_region
          _
        $region32: #{tpu_custom_call.1} parent=11 // pred_fallthru
          _
      $region12: #{tpu_custom_call.1} parent=5 // pred_fallthru
        _
      %p214 = scmp.lt.s32.totalorder %s16, 2
      // Predicated region
      $region33: #{tpu_custom_call.1} parent=5 // pred_check
        %p215 = pneg %p214
      $region34: #{tpu_custom_call.1} parent=5 // pred_check_branch
        %217 = sbr.rel (%p215) target = $region36
      $region35: #{tpu_custom_call.1} parent=5 // pred_region
        // Predicated region
        $region37: #{tpu_custom_call.1} parent=35 // pred_check
          %p218 = pneg %p36
        $region38: #{tpu_custom_call.1} parent=35 // pred_check_branch
          %220 = sbr.rel (%p218) target = $region40
        $region39: #{tpu_custom_call.1} parent=35 // pred_region
          %s221 = sand.u32 %s26, 1
          %s222 = scalar_lea.sflag [#allocation3], %s221
          %s223 = sand.u32 %s26, 1
          %s224 = smul.addr %s223, 8
          %s225 = scalar_lea.vmem [#allocation2], %s224
          %227 = vsyncadd %s222, 0
          %s228 = smul.addr %s16, 8
          %s229 = scalar_lea.hbm %s0, %s228
          %s231 = sshll.u32 %s229, 4
          %s232 = int_to_ptr.hbm [resolvable:$true] %s231
          %s233 = sshll.u32 %s225, 4
          %s234 = int_to_ptr.vmem [resolvable:$true] %s233
          %236 = dma.hbm_to_vmem [thread:$0]  %s232, 128, %s234, %s222
        $region40: #{tpu_custom_call.1} parent=35 // pred_fallthru
          _
      $region36: #{tpu_custom_call.1} parent=5 // pred_fallthru
        _
      %p237 = scmp.le.s32.totalorder 1, %s16
      %p238 = scmp.lt.s32.totalorder %s16, 3
      %p239 = pnand %p237, %p238
      %p240 = pneg %p239
      // Predicated region
      $region41: #{tpu_custom_call.1} parent=5 // pred_check
        _
      $region42: #{tpu_custom_call.1} parent=5 // pred_check_branch
        %242 = sbr.rel (%p239) target = $region44
      $region43: #{tpu_custom_call.1} parent=5 // pred_region
        %s243 = ssub.s32 %s16, 1
        %s244 = sand.u32 %s29, 1
        %s245 = scalar_lea.sflag [#allocation3], %s244
        %s246 = sand.u32 %s29, 1
        %s247 = smul.addr %s246, 8
        %s248 = scalar_lea.vmem [#allocation2], %s247
        // Predicated region
        $region45: #{tpu_custom_call.1} parent=43 // pred_check
          %p249 = pneg %p42
        $region46: #{tpu_custom_call.1} parent=43 // pred_check_branch
          %251 = sbr.rel (%p249) target = $region48
        $region47: #{tpu_custom_call.1} parent=43 // pred_region
          %253 = dma.done %s245, 128
        $region48: #{tpu_custom_call.1} parent=43 // pred_fallthru
          _
        // Predicated region
        $region49: #{tpu_custom_call.1} parent=43 // pred_check
          %p254 = pneg %p63
        $region50: #{tpu_custom_call.1} parent=43 // pred_check_branch
          %256 = sbr.rel (%p254) target = $region52
        $region51: #{tpu_custom_call.1} parent=43 // pred_region
          %258 = dma.done [#allocation5], 256
        $region52: #{tpu_custom_call.1} parent=43 // pred_fallthru
          _
        %s259 = sand.u32 %s29, 1
        %s260 = scalar_lea.sflag [#allocation3], %s259
        %s261 = sand.u32 %s29, 1
        %s262 = smul.addr %s261, 8
        %s263 = scalar_lea.vmem [#allocation2], %s262
        %p264 = pneg %p42
        %p265 = pneg %p39
        %p266 = pneg %p63
        %p267 = pneg %p60
        %p268 = pneg %p84
        %p269 = pneg %p81
        %p270 = pneg %p105
        %p271 = pneg %p102
        %p272 = pneg %p126
        %p273 = pneg %p123
        %p274 = pneg %p147
        %p275 = pneg %p144
        %p276 = pneg %p173
        %p277 = pneg %p170
        %p278 = scmp.lt.s32.totalorder %s21, 1
        %s279 = scalar_select %p278, %s21, 1
        %s280 = smul.addr %s279, 8
        %s281 = scalar_lea.vmem %s6, %s280
        %p282 = scmp.lt.s32.totalorder %s21, 1
        %s283 = scalar_select %p282, %s21, 1
        %s284 = smul.addr %s283, 8
        %s285 = scalar_lea.vmem %s6, %s284
        %v286 = vld [vmem:[%s248] sm:$0xff]
        %v287 = vld [vmem:[#allocation4] sm:$0xff]
        %v288 = vld [vmem:[#allocation4 + $0x8] sm:$0xff]
        %v289 = vld [vmem:[%s2] sm:$0x1]
        %v290 = vperm.slane %v289, 0
        %vm291 = vcmask 130048
        %v293 = vsel %vm291, %v286, 0
        %295 = vmatpush.msra.mxu0 0.0
        %296 = vmatpush.msra.mxu0 0.0
        %297 = vmatpush.msra.mxu0 0.0
        %298 = vmatpush.msra.mxu0 0.0
        %299 = vmatpush.msra.mxu0 0.0
        %300 = vmatpush.msra.mxu0 0.0
        %301 = vmatpush.msra.mxu0 0.0
        %302 = vmatpush.msra.mxu0 0.0
        %303 = vmatpush.msra.mxu0 0.0
        %304 = vmatpush.msra.mxu0 0.0
        %305 = vmatpush.msra.mxu0 0.0
        %306 = vmatpush.msra.mxu0 0.0
        %307 = vmatpush.msra.mxu0 0.0
        %308 = vmatpush.msra.mxu0 0.0
        %309 = vmatpush.msra.mxu0 %v288
        %310 = vmatpush.msra.mxu0 %v287
        %311 = vmatmul.f32.gmra.mxu0 %v293
        %v312 = vpop.f32.mrf.mxu0
        %v313 = vadd.f32 %v290, %v312
        %314 = vdwg.mxu0
        %v315 = vmax.f32 %v313, 0.0
        %v316 = vld [vmem:[%s3] sm:$0xff]
        %v317 = vld [vmem:[%s3 + $0x8] sm:$0xff]
        %v318 = vld [vmem:[%s3 + $0x10] sm:$0xff]
        %v319 = vld [vmem:[%s3 + $0x18] sm:$0xff]
        %v320 = vld [vmem:[%s3 + $0x20] sm:$0xff]
        %v321 = vld [vmem:[%s3 + $0x28] sm:$0xff]
        %v322 = vld [vmem:[%s3 + $0x30] sm:$0xff]
        %v323 = vld [vmem:[%s3 + $0x38] sm:$0xff]
        %v324 = vld [vmem:[%s3 + $0x40] sm:$0xff]
        %v325 = vld [vmem:[%s3 + $0x48] sm:$0xff]
        %v326 = vld [vmem:[%s3 + $0x50] sm:$0xff]
        %v327 = vld [vmem:[%s3 + $0x58] sm:$0xff]
        %v328 = vld [vmem:[%s3 + $0x60] sm:$0xff]
        %v329 = vld [vmem:[%s3 + $0x68] sm:$0xff]
        %v330 = vld [vmem:[%s3 + $0x70] sm:$0xff]
        %v331 = vld [vmem:[%s3 + $0x78] sm:$0xff]
        %v332 = vld [vmem:[%s2 + $0x1] sm:$0x1]
        %v333 = vperm.slane %v332, 0
        %334 = vmatpush.msra.mxu0 %v331
        %335 = vmatpush.msra.mxu0 %v330
        %336 = vmatpush.msra.mxu0 %v329
        %337 = vmatpush.msra.mxu0 %v328
        %338 = vmatpush.msra.mxu0 %v327
        %339 = vmatpush.msra.mxu0 %v326
        %340 = vmatpush.msra.mxu0 %v325
        %341 = vmatpush.msra.mxu0 %v324
        %342 = vmatpush.msra.mxu0 %v323
        %343 = vmatpush.msra.mxu0 %v322
        %344 = vmatpush.msra.mxu0 %v321
        %345 = vmatpush.msra.mxu0 %v320
        %346 = vmatpush.msra.mxu0 %v319
        %347 = vmatpush.msra.mxu0 %v318
        %348 = vmatpush.msra.mxu0 %v317
        %349 = vmatpush.msra.mxu0 %v316
        %350 = vmatmul.f32.gmra.mxu0 %v315
        %v351 = vpop.f32.mrf.mxu0
        %v352 = vadd.f32 %v333, %v351
        %353 = vdwg.mxu0
        %v354 = vmax.f32 %v352, 0.0
        %v355 = vld [vmem:[%s4] sm:$0xff]
        %v356 = vld [vmem:[%s4 + $0x8] sm:$0xff]
        %v357 = vld [vmem:[%s4 + $0x10] sm:$0xff]
        %v358 = vld [vmem:[%s4 + $0x18] sm:$0xff]
        %v359 = vld [vmem:[%s4 + $0x20] sm:$0xff]
        %v360 = vld [vmem:[%s4 + $0x28] sm:$0xff]
        %v361 = vld [vmem:[%s4 + $0x30] sm:$0xff]
        %v362 = vld [vmem:[%s4 + $0x38] sm:$0xff]
        %v363 = vld [vmem:[%s4 + $0x40] sm:$0xff]
        %v364 = vld [vmem:[%s4 + $0x48] sm:$0xff]
        %v365 = vld [vmem:[%s4 + $0x50] sm:$0xff]
        %v366 = vld [vmem:[%s4 + $0x58] sm:$0xff]
        %v367 = vld [vmem:[%s4 + $0x60] sm:$0xff]
        %v368 = vld [vmem:[%s4 + $0x68] sm:$0xff]
        %v369 = vld [vmem:[%s4 + $0x70] sm:$0xff]
        %v370 = vld [vmem:[%s4 + $0x78] sm:$0xff]
        %v371 = vld [vmem:[%s5] sm:$0x1]
        %v372 = vperm.slane %v371, 0
        %373 = vmatpush.msra.mxu0 %v370
        %374 = vmatpush.msra.mxu0 %v369
        %375 = vmatpush.msra.mxu0 %v368
        %376 = vmatpush.msra.mxu0 %v367
        %377 = vmatpush.msra.mxu0 %v366
        %378 = vmatpush.msra.mxu0 %v365
        %379 = vmatpush.msra.mxu0 %v364
        %380 = vmatpush.msra.mxu0 %v363
        %381 = vmatpush.msra.mxu0 %v362
        %382 = vmatpush.msra.mxu0 %v361
        %383 = vmatpush.msra.mxu0 %v360
        %384 = vmatpush.msra.mxu0 %v359
        %385 = vmatpush.msra.mxu0 %v358
        %386 = vmatpush.msra.mxu0 %v357
        %387 = vmatpush.msra.mxu0 %v356
        %388 = vmatpush.msra.mxu0 %v355
        %389 = vmatmul.f32.gmra.mxu0 %v354
        %v390 = vpop.f32.mrf.mxu0
        %v391 = vadd.f32 %v372, %v390
        %392 = vdwg.mxu0
        %v393 = vld [vmem:[%s5 + $0x1] sm:$0x1]
        %v394 = vperm.slane %v393, 0
        %v395 = vmax.f32 %v391, %v394
        %v396 = vld [vmem:[%s5 + $0x2] sm:$0x1]
        %v397 = vperm.slane %v396, 0
        %v398 = vmin.f32 %v395, %v397
        %vm399 = vcmask 64512
        %400 = vst.msk [vmem:[%s285] sm:$0xff] %vm399, %v398
        %p401 = scmp.lt.s32.totalorder %s21, 1
        %s402 = scalar_select %p401, %s21, 1
        %s403 = smul.addr %s402, 8
        %s404 = scalar_lea.vmem %s6, %s403
        // Predicated region
        $region53: #{tpu_custom_call.1} parent=43 // pred_check
          %p405 = pneg %p170
        $region54: #{tpu_custom_call.1} parent=43 // pred_check_branch
          %407 = sbr.rel (%p405) target = $region56
        $region55: #{tpu_custom_call.1} parent=43 // pred_region
          _
        $region56: #{tpu_custom_call.1} parent=43 // pred_fallthru
          _
      $region44: #{tpu_custom_call.1} parent=5 // pred_fallthru
        _
      %p408 = scmp.le.s32.totalorder 2, %s16
      // Predicated region
      $region57: #{tpu_custom_call.1} parent=5 // pred_check
        %p409 = pneg %p408
      $region58: #{tpu_custom_call.1} parent=5 // pred_check_branch
        %411 = sbr.rel (%p409) target = $region60
      $region59: #{tpu_custom_call.1} parent=5 // pred_region
        %s412 = ssub.s32 %s16, 2
        // Predicated region
        $region61: #{tpu_custom_call.1} parent=59 // pred_check
          %p413 = pneg %p176
        $region62: #{tpu_custom_call.1} parent=59 // pred_check_branch
          %415 = sbr.rel (%p413) target = $region64
        $region63: #{tpu_custom_call.1} parent=59 // pred_region
          %p416 = scmp.lt.s32.totalorder %s22, 1
          %s417 = scalar_select %p416, %s22, 1
          %s418 = smul.addr %s417, 8
          %s419 = scalar_lea.vmem %s6, %s418
        $region64: #{tpu_custom_call.1} parent=59 // pred_fallthru
          _
      $region60: #{tpu_custom_call.1} parent=5 // pred_fallthru
        _
    $region6: #{tpu_custom_call.1} parent=1 // loop_footer
      %s20 = sadd.s32 1, %s16
    $region7: #{tpu_custom_call.1} parent=1 // loop_footer_branch
      %15 = sbr.rel target = $region3
    $region8: #{tpu_custom_call.1} parent=1 // loop_exit
      _
    %420 = vsyncpa [#allocation3], 1
    %s421 = scalar_lea.sflag [#allocation3], 1
    %422 = vsyncpa %s421, 1
    %423 = vsyncpa [#allocation5], 1

</llo_original>
